<compile_context>
chip_gen: v5e
topology: v5e:2x2
jax: 0.10.0
libtpu: 0.0.40
codegen_flags: <defaults>
</compile_context>

<pallas_src>
import jax
import jax.numpy as jnp
from jax.experimental import pallas as pl
from jax.experimental.pallas import tpu as pltpu


def _ceil_to(x, m):
    return ((x + m - 1) // m) * m


# ---------------------------------------------------------------------------
# Kernel: full ReLUKAN stack, one batch tile per grid step, one dot per layer.
# ---------------------------------------------------------------------------
def _relu_kan_fused_kernel(x_ref, *refs):
    out_ref = refs[-1]
    layer_refs = refs[:-1]
    num_layers = len(layer_refs) // 4

    a = x_ref[...]                                   # (TM, dp0) f32, lane-padded
    for i in range(num_layers):
        plo_ref, phi_ref, w_ref, b_ref = layer_refs[4 * i: 4 * i + 4]
        dp = a.shape[1]
        gdp = plo_ref.shape[1]
        G = gdp // dp
        # Lane-dense basis slab: G copies of the activation along lanes.
        # Slab column p*dp + d holds a[:, d]; the flattened phase tables and
        # weight rows use the same layout, so ONE matmul with K = G*dp
        # replaces G small dots + a serial accumulate chain.
        ax = jnp.concatenate([a] * G, axis=1)        # (TM, G*dp), 128-aligned parts
        lo = plo_ref[...]                            # (1, G*dp): single sublane bcast
        hi = phi_ref[...]
        x1 = jnp.maximum(ax - lo, 0.0)               # relu(x - phase_low)     (f32)
        x2 = jnp.maximum(hi - ax, 0.0)               # relu(phase_high - x)    (f32)
        f = x1 * x2
        f = f * f                                    # (x1*x2)**2 ; r**2 folded into w
        w = w_ref[...]                               # (G*dp, np_out), bf16 (or f32)
        a = jnp.dot(f.astype(w.dtype), w,
                    preferred_element_type=jnp.float32) + b_ref[...]
    out_ref[...] = a.astype(out_ref.dtype)


# ---------------------------------------------------------------------------
# Parameter prep: flattened, lane-padded, r**2-scaled, bf16 matmul operands.
# ---------------------------------------------------------------------------
def prepare_params(params, *, g, k, matmul_dtype=jnp.bfloat16):
    G = g + k
    r2 = (4.0 * g * g / ((k + 1) * (k + 1))) ** 2
    prepped = []
    d_prev_padded = None
    for idx, p in enumerate(params):
        d_in = p["phase_low"].shape[0]
        d_out = p["conv_w"].shape[0]
        # Activation width as the kernel sees it: lane-padded raw input width
        # for layer 0, lane-padded output width of the previous layer after.
        dp = _ceil_to(d_in, 128) if idx == 0 else d_prev_padded
        np_out = _ceil_to(d_out, 128)

        # Phase tables flattened to (1, G*dp); column p*dp + d <-> phase[d, p].
        # Padded columns get lo = hi = 0 => relu(a)*relu(-a) = 0 => f = 0.
        plo = jnp.zeros((G, dp), jnp.float32).at[:, :d_in].set(p["phase_low"].T)
        phi = jnp.zeros((G, dp), jnp.float32).at[:, :d_in].set(p["phase_high"].T)
        plo = plo.reshape(1, G * dp)
        phi = phi.reshape(1, G * dp)

        # Weight pairing follows the torch `.reshape((B,1,g+k,D_in))` quirk:
        # conv_w.reshape(O, D, G)[o, d, p] multiplies basis element (d, p),
        # i.e. slab column p*dp + d.  r**2 folded in; padded rows/cols stay 0.
        wq = p["conv_w"].reshape(d_out, d_in, G)
        w3 = jnp.transpose(wq, (2, 1, 0)) * r2                 # (G, d_in, d_out)
        w = jnp.zeros((G, dp, np_out), jnp.float32).at[:, :d_in, :d_out].set(w3)
        w = w.reshape(G * dp, np_out).astype(matmul_dtype)     # (G*dp, np_out)
        b = jnp.zeros((1, np_out), jnp.float32).at[0, :d_out].set(p["conv_b"])

        prepped.append(dict(plo=plo, phi=phi, w=w, b=b,
                            d_in=d_in, d_out=d_out, dp=dp))
        d_prev_padded = np_out
    return prepped


def _vmem_budget_bytes(prepped, tm, dp0):
    # Constant operands (pipeline still double-buffers them today).
    const_b = 2 * sum(int(layer[n].size) * layer[n].dtype.itemsize
                      for layer in prepped for n in ("plo", "phi", "w", "b"))
    np_last = prepped[-1]["b"].shape[1]
    io_b = 2 * tm * (dp0 + np_last) * 4                        # 2x in/out tiles
    max_gdp = max(layer["plo"].shape[1] for layer in prepped)
    slab_b = 6 * tm * max_gdp * 4                              # ax/x1/x2/f + slack
    return const_b + io_b + slab_b


# ---------------------------------------------------------------------------
# Forward wrapper: batch-tiled grid, constants VMEM-resident.
# ---------------------------------------------------------------------------
def relu_kan_forward(prepped, x, *, block_rows=1024):
    if x.ndim == 3:                                  # matches torch x.squeeze(-1)
        x = jnp.squeeze(x, axis=-1)
    x = x.astype(jnp.float32)
    B, d_in = x.shape
    assert d_in == prepped[0]["d_in"], (d_in, prepped[0]["d_in"])

    dp0 = prepped[0]["dp"]
    n_last = prepped[-1]["d_out"]
    np_last = prepped[-1]["b"].shape[1]

    # Batch tile: multiple of 8 sublanes; for big batches cap at half the
    # (padded) batch so the "parallel" grid has >= 2 steps (v7x megacore);
    # auto-shrink if the VMEM footprint would exceed the budget.
    tm = max(8, (min(block_rows, _ceil_to(B, 8)) // 8) * 8)
    if B >= 256 and 2 * tm > _ceil_to(B, 8):
        tm = _ceil_to(B, 16) // 2
    while tm > 8 and _vmem_budget_bytes(prepped, tm, dp0) > 40 * 1024 * 1024:
        tm = max(8, (tm // 2 // 8) * 8)

    b_pad = _ceil_to(B, tm)
    x = jnp.pad(x, ((0, b_pad - B), (0, dp0 - d_in)))    # batch rows + lane pad

    in_specs = [pl.BlockSpec((tm, dp0), lambda m: (m, 0))]
    operands = [x]
    for layer in prepped:
        for name in ("plo", "phi", "w", "b"):
            arr = layer[name]
            # Full-array block + constant index_map => fetched once, stays
            # VMEM-resident across all batch grid steps.
            in_specs.append(pl.BlockSpec(arr.shape, lambda m: (0, 0)))
            operands.append(arr)

    vmem_limit = int(min(40 * 1024 * 1024,
                         max(16 * 1024 * 1024,
                             _vmem_budget_bytes(prepped, tm, dp0))))
    out = pl.pallas_call(
        _relu_kan_fused_kernel,
        out_shape=jax.ShapeDtypeStruct((b_pad, np_last), jnp.float32),
        grid=(b_pad // tm,),
        in_specs=in_specs,
        out_specs=pl.BlockSpec((tm, np_last), lambda m: (m, 0)),
        compiler_params=pltpu.CompilerParams(
            dimension_semantics=("parallel",),
            vmem_limit_bytes=vmem_limit,
        ),
    )(*operands)
    return out[:B, :n_last]


# ---------------------------------------------------------------------------
# Deterministic init (mirrors ReLUKANLayer.__init__ shapes)
# ---------------------------------------------------------------------------
def init_relu_kan(key, width, grid=5, k=3):
    params = []
    G = grid + k
    for i in range(len(width) - 1):
        d_in, d_out = width[i], width[i + 1]
        key, kw, kb = jax.random.split(key, 3)
        phase_low = jnp.arange(-k, grid, dtype=jnp.float32) / grid        # (G,)
        phase_low = jnp.broadcast_to(phase_low[None, :], (d_in, G))
        phase_high = phase_low + (k + 1) / grid
        fan_in = G * d_in
        bound = float(1.0 / (fan_in ** 0.5))
        conv_w = jax.random.uniform(kw, (d_out, 1, G, d_in), jnp.float32,
                                    minval=-bound, maxval=bound)
        conv_b = jax.random.uniform(kb, (d_out,), jnp.float32,
                                    minval=-bound, maxval=bound)
        params.append(dict(phase_low=phase_low, phase_high=phase_high,
                           conv_w=conv_w, conv_b=conv_b))
    return params


# ---------------------------------------------------------------------------
# Pure-JAX reference (mirrors the PyTorch forward exactly) for validation
# ---------------------------------------------------------------------------
def relu_kan_reference(params, x, *, grid=5, k=3):
    if x.ndim == 3:
        x = jnp.squeeze(x, axis=-1)
    r = 4.0 * grid * grid / ((k + 1) * (k + 1))
    for p in params:
        xe = x[:, :, None]                                   # (B, D_in, 1)
        x1 = jax.nn.relu(xe - p["phase_low"][None])
        x2 = jax.nn.relu(p["phase_high"][None] - xe)
        feat = x1 * x2 * r
        feat = feat * feat                                    # (B, D_in, G)
        d_out = p["conv_w"].shape[0]
        f_flat = feat.reshape(feat.shape[0], -1)              # row-major flat
        w_flat = p["conv_w"].reshape(d_out, -1)               # row-major flat
        x = f_flat @ w_flat.T + p["conv_b"]
    return x


if __name__ == "__main__":
    width = [8, 32, 4]          # ReLUKAN(width=[8, 32, 4], grid=5, k=3)
    g, k = 5, 3
    key = jax.random.PRNGKey(0)
    kp, kx1, kx2 = jax.random.split(key, 3)

    params = init_relu_kan(kp, width, grid=g, k=k)
    prepped_bf16 = prepare_params(params, g=g, k=k)                       # bf16 MXU operands
    prepped_f32 = prepare_params(params, g=g, k=k, matmul_dtype=jnp.float32)

    # Small case (batch=2), single-tile grid. f32 weights: tight semantics check.
    x_small = jax.random.uniform(kx1, (2, width[0]), dtype=jnp.float32)
    ref = relu_kan_reference(params, x_small, grid=g, k=k)

    out_f32 = jax.block_until_ready(relu_kan_forward(prepped_f32, x_small))
    assert out_f32.shape == (2, width[-1]), out_f32.shape
    assert bool(jnp.allclose(out_f32, ref, atol=1e-3, rtol=1e-3)), "mismatch (f32 small)"

    # Same inputs through the bf16-matmul path (looser tolerance for bf16 MXU).
    out_bf16 = jax.block_until_ready(relu_kan_forward(prepped_bf16, x_small))
    assert out_bf16.shape == (2, width[-1]), out_bf16.shape
    assert bool(jnp.allclose(out_bf16, ref, atol=5e-3, rtol=5e-3)), "mismatch (bf16 small)"

    # Larger, non-multiple batch: exercises batch padding + multi-step grid.
    x_big = jax.random.uniform(kx2, (300, width[0]), dtype=jnp.float32)
    ref_b = relu_kan_reference(params, x_big, grid=g, k=k)
    out_b = jax.block_until_ready(relu_kan_forward(prepped_bf16, x_big, block_rows=128))
    assert out_b.shape == (300, width[-1]), out_b.shape
    assert bool(jnp.allclose(out_b, ref_b, atol=5e-3, rtol=5e-3)), "mismatch (bf16 big)"

    print("KERNEL_OK")
</pallas_src>

<mosaic_0001>
module attributes {stable_mosaic.version = 11 : i64} {
  func.func @_relu_kan_fused_kernel(%arg0: i32, %arg1: memref<8x128xf32, #tpu.memory_space<vmem>>, %arg2: memref<1x1024xf32, #tpu.memory_space<vmem>>, %arg3: memref<1x1024xf32, #tpu.memory_space<vmem>>, %arg4: memref<1024x128xf32, #tpu.memory_space<vmem>>, %arg5: memref<1x128xf32, #tpu.memory_space<vmem>>, %arg6: memref<1x1024xf32, #tpu.memory_space<vmem>>, %arg7: memref<1x1024xf32, #tpu.memory_space<vmem>>, %arg8: memref<1024x128xf32, #tpu.memory_space<vmem>>, %arg9: memref<1x128xf32, #tpu.memory_space<vmem>>, %arg10: memref<8x128xf32, #tpu.memory_space<vmem>>) attributes {dimension_semantics = [#tpu.dimension_semantics<parallel>], iteration_bounds = array<i64: 1>, scalar_prefetch = 0 : i64, scratch_operands = 0 : i64, tpu.core_type = #tpu.core_type<tc>, window_params = [{transform_indices = @transform_0, window_bounds = array<i64: 8, 128>}, {pipeline_mode = #tpu.pipeline_mode<synchronous>, transform_indices = @transform_1, window_bounds = array<i64: 1, 1024>}, {pipeline_mode = #tpu.pipeline_mode<synchronous>, transform_indices = @transform_2, window_bounds = array<i64: 1, 1024>}, {pipeline_mode = #tpu.pipeline_mode<synchronous>, transform_indices = @transform_3, window_bounds = array<i64: 1024, 128>}, {pipeline_mode = #tpu.pipeline_mode<synchronous>, transform_indices = @transform_4, window_bounds = array<i64: 1, 128>}, {pipeline_mode = #tpu.pipeline_mode<synchronous>, transform_indices = @transform_5, window_bounds = array<i64: 1, 1024>}, {pipeline_mode = #tpu.pipeline_mode<synchronous>, transform_indices = @transform_6, window_bounds = array<i64: 1, 1024>}, {pipeline_mode = #tpu.pipeline_mode<synchronous>, transform_indices = @transform_7, window_bounds = array<i64: 1024, 128>}, {pipeline_mode = #tpu.pipeline_mode<synchronous>, transform_indices = @transform_8, window_bounds = array<i64: 1, 128>}, {transform_indices = @transform_9, window_bounds = array<i64: 8, 128>}]} {
    %c0 = arith.constant 0 : index
    %c0_0 = arith.constant 0 : index
    %0 = vector.load %arg1[%c0, %c0_0] : memref<8x128xf32, #tpu.memory_space<vmem>>, vector<8x128xf32>
    %1 = tpu.concatenate %0, %0, %0, %0, %0, %0, %0, %0 in 1 : vector<8x128xf32>, vector<8x128xf32>, vector<8x128xf32>, vector<8x128xf32>, vector<8x128xf32>, vector<8x128xf32>, vector<8x128xf32>, vector<8x128xf32> -> vector<8x1024xf32>
    %c0_1 = arith.constant 0 : index
    %c0_2 = arith.constant 0 : index
    %2 = vector.load %arg2[%c0_1, %c0_2] : memref<1x1024xf32, #tpu.memory_space<vmem>>, vector<1x1024xf32>
    %c0_3 = arith.constant 0 : index
    %c0_4 = arith.constant 0 : index
    %3 = vector.load %arg3[%c0_3, %c0_4] : memref<1x1024xf32, #tpu.memory_space<vmem>>, vector<1x1024xf32>
    %4 = vector.broadcast %2 : vector<1x1024xf32> to vector<8x1024xf32>
    %5 = arith.subf %1, %4 : vector<8x1024xf32>
    %cst = arith.constant 0.000000e+00 : f32
    %6 = vector.broadcast %cst : f32 to vector<8x1024xf32>
    %7 = arith.maximumf %5, %6 : vector<8x1024xf32>
    %8 = vector.broadcast %3 : vector<1x1024xf32> to vector<8x1024xf32>
    %9 = arith.subf %8, %1 : vector<8x1024xf32>
    %cst_5 = arith.constant 0.000000e+00 : f32
    %10 = vector.broadcast %cst_5 : f32 to vector<8x1024xf32>
    %11 = arith.maximumf %9, %10 : vector<8x1024xf32>
    %12 = arith.mulf %7, %11 : vector<8x1024xf32>
    %13 = arith.mulf %12, %12 : vector<8x1024xf32>
    %c0_6 = arith.constant 0 : index
    %c0_7 = arith.constant 0 : index
    %14 = vector.load %arg4[%c0_6, %c0_7] : memref<1024x128xf32, #tpu.memory_space<vmem>>, vector<1024x128xf32>
    %cst_8 = arith.constant dense<0.000000e+00> : vector<8x128xf32>
    %15 = tpu.matmul %13, %14, %cst_8 {dimension_numbers = #tpu.dot_dimension_numbers<[1], [0], [0], [1], [0, 0, 1, 1], [], []>} : vector<8x1024xf32>, vector<1024x128xf32>, vector<8x128xf32> -> vector<8x128xf32>
    %c0_9 = arith.constant 0 : index
    %c0_10 = arith.constant 0 : index
    %16 = vector.load %arg5[%c0_9, %c0_10] : memref<1x128xf32, #tpu.memory_space<vmem>>, vector<1x128xf32>
    %17 = vector.broadcast %16 : vector<1x128xf32> to vector<8x128xf32>
    %18 = arith.addf %15, %17 : vector<8x128xf32>
    %19 = tpu.concatenate %18, %18, %18, %18, %18, %18, %18, %18 in 1 : vector<8x128xf32>, vector<8x128xf32>, vector<8x128xf32>, vector<8x128xf32>, vector<8x128xf32>, vector<8x128xf32>, vector<8x128xf32>, vector<8x128xf32> -> vector<8x1024xf32>
    %c0_11 = arith.constant 0 : index
    %c0_12 = arith.constant 0 : index
    %20 = vector.load %arg6[%c0_11, %c0_12] : memref<1x1024xf32, #tpu.memory_space<vmem>>, vector<1x1024xf32>
    %c0_13 = arith.constant 0 : index
    %c0_14 = arith.constant 0 : index
    %21 = vector.load %arg7[%c0_13, %c0_14] : memref<1x1024xf32, #tpu.memory_space<vmem>>, vector<1x1024xf32>
    %22 = vector.broadcast %20 : vector<1x1024xf32> to vector<8x1024xf32>
    %23 = arith.subf %19, %22 : vector<8x1024xf32>
    %cst_15 = arith.constant 0.000000e+00 : f32
    %24 = vector.broadcast %cst_15 : f32 to vector<8x1024xf32>
    %25 = arith.maximumf %23, %24 : vector<8x1024xf32>
    %26 = vector.broadcast %21 : vector<1x1024xf32> to vector<8x1024xf32>
    %27 = arith.subf %26, %19 : vector<8x1024xf32>
    %cst_16 = arith.constant 0.000000e+00 : f32
    %28 = vector.broadcast %cst_16 : f32 to vector<8x1024xf32>
    %29 = arith.maximumf %27, %28 : vector<8x1024xf32>
    %30 = arith.mulf %25, %29 : vector<8x1024xf32>
    %31 = arith.mulf %30, %30 : vector<8x1024xf32>
    %c0_17 = arith.constant 0 : index
    %c0_18 = arith.constant 0 : index
    %32 = vector.load %arg8[%c0_17, %c0_18] : memref<1024x128xf32, #tpu.memory_space<vmem>>, vector<1024x128xf32>
    %cst_19 = arith.constant dense<0.000000e+00> : vector<8x128xf32>
    %33 = tpu.matmul %31, %32, %cst_19 {dimension_numbers = #tpu.dot_dimension_numbers<[1], [0], [0], [1], [0, 0, 1, 1], [], []>} : vector<8x1024xf32>, vector<1024x128xf32>, vector<8x128xf32> -> vector<8x128xf32>
    %c0_20 = arith.constant 0 : index
    %c0_21 = arith.constant 0 : index
    %34 = vector.load %arg9[%c0_20, %c0_21] : memref<1x128xf32, #tpu.memory_space<vmem>>, vector<1x128xf32>
    %35 = vector.broadcast %34 : vector<1x128xf32> to vector<8x128xf32>
    %36 = arith.addf %33, %35 : vector<8x128xf32>
    %c0_22 = arith.constant 0 : index
    %c0_23 = arith.constant 0 : index
    %37 = vector.load %arg10[%c0_22, %c0_23] : memref<8x128xf32, #tpu.memory_space<vmem>>, vector<8x128xf32>
    tpu.vector_store %arg10[%c0_22, %c0_23], %36 {strides = array<i32>} : memref<8x128xf32, #tpu.memory_space<vmem>>, vector<8x128xf32>,
    return
  }
  func.func @transform_0(%arg0: i32) -> (i32, i32) {
    %c0_i32 = arith.constant 0 : i32
    %c0_i32_0 = arith.constant 0 : i32
    return %arg0, %c0_i32 : i32, i32
  }
  func.func @transform_1(%arg0: i32) -> (i32, i32) {
    %c0_i32 = arith.constant 0 : i32
    %c0_i32_0 = arith.constant 0 : i32
    %c0_i32_1 = arith.constant 0 : i32
    return %c0_i32, %c0_i32_0 : i32, i32
  }
  func.func @transform_2(%arg0: i32) -> (i32, i32) {
    %c0_i32 = arith.constant 0 : i32
    %c0_i32_0 = arith.constant 0 : i32
    %c0_i32_1 = arith.constant 0 : i32
    return %c0_i32, %c0_i32_0 : i32, i32
  }
  func.func @transform_3(%arg0: i32) -> (i32, i32) {
    %c0_i32 = arith.constant 0 : i32
    %c0_i32_0 = arith.constant 0 : i32
    %c0_i32_1 = arith.constant 0 : i32
    return %c0_i32, %c0_i32_0 : i32, i32
  }
  func.func @transform_4(%arg0: i32) -> (i32, i32) {
    %c0_i32 = arith.constant 0 : i32
    %c0_i32_0 = arith.constant 0 : i32
    %c0_i32_1 = arith.constant 0 : i32
    return %c0_i32, %c0_i32_0 : i32, i32
  }
  func.func @transform_5(%arg0: i32) -> (i32, i32) {
    %c0_i32 = arith.constant 0 : i32
    %c0_i32_0 = arith.constant 0 : i32
    %c0_i32_1 = arith.constant 0 : i32
    return %c0_i32, %c0_i32_0 : i32, i32
  }
  func.func @transform_6(%arg0: i32) -> (i32, i32) {
    %c0_i32 = arith.constant 0 : i32
    %c0_i32_0 = arith.constant 0 : i32
    %c0_i32_1 = arith.constant 0 : i32
    return %c0_i32, %c0_i32_0 : i32, i32
  }
  func.func @transform_7(%arg0: i32) -> (i32, i32) {
    %c0_i32 = arith.constant 0 : i32
    %c0_i32_0 = arith.constant 0 : i32
    %c0_i32_1 = arith.constant 0 : i32
    return %c0_i32, %c0_i32_0 : i32, i32
  }
  func.func @transform_8(%arg0: i32) -> (i32, i32) {
    %c0_i32 = arith.constant 0 : i32
    %c0_i32_0 = arith.constant 0 : i32
    %c0_i32_1 = arith.constant 0 : i32
    return %c0_i32, %c0_i32_0 : i32, i32
  }
  func.func @transform_9(%arg0: i32) -> (i32, i32) {
    %c0_i32 = arith.constant 0 : i32
    %c0_i32_0 = arith.constant 0 : i32
    return %arg0, %c0_i32 : i32, i32
  }
}

</mosaic_0001>

<llo_original>
// kernel: tpu_custom_call.1
$region0: #{tpu_custom_call.1}
  #allocation0 [shape = 'u32[]', space=smem, size = 0x4, offset = 0x4, fixed_abs, tag = 'smem constant byte address 0x4 - core index']
  #allocation1 [shape = 'u32[72,128]{1,0:T(1,128)}', space=vmem, size = 0x9000, scoped, tag = 'internal scratch']
  %s0 = inlined_call_operand.hbm [shape: f32[8,128], index: 0, kind: input, shape index: {}]
  %s1 = inlined_call_operand.hbm [shape: f32[1,1024], index: 1, kind: input, shape index: {}]
  %s2 = inlined_call_operand.hbm [shape: f32[1,1024], index: 2, kind: input, shape index: {}]
  %s3 = inlined_call_operand.hbm [shape: f32[1024,128], index: 3, kind: input, shape index: {}]
  %s4 = inlined_call_operand.vmem [shape: f32[1,128], index: 4, kind: input, shape index: {}]
  %s5 = inlined_call_operand.hbm [shape: f32[1,1024], index: 5, kind: input, shape index: {}]
  %s6 = inlined_call_operand.hbm [shape: f32[1,1024], index: 6, kind: input, shape index: {}]
  %s7 = inlined_call_operand.hbm [shape: f32[1024,128], index: 7, kind: input, shape index: {}]
  %s8 = inlined_call_operand.vmem [shape: f32[1,128], index: 8, kind: input, shape index: {}]
  %s9 = inlined_call_operand.hbm [shape: f32[8,128], index: 9, kind: output, shape index: {}]
  %s10 = sld [smem:[#allocation0]]
  $region74: #{tpu_custom_call.1} parent=0
    _
  %s12 = ssub.s32 1, %s10
  %s13 = scalar_select 0, %s12, %s10
  $region1: #{tpu_custom_call.1} parent=0
    #allocation2 [shape = 'u8[4096]{0}', space=vmem, size = 0x1000, scoped, tag = 'input window, operand 0, single buffered']
    #allocation3 [shape = 's32[1]{0}', space=sflag, size = 0x4, scoped, tag = 'scoped memory for tpu_custom_call.1']
    #allocation4 [shape = 's32[1]{0}', space=sflag, size = 0x4, scoped, tag = 'scoped memory for tpu_custom_call.1']
    #allocation5 [shape = 'u8[4096]{0}', space=vmem, size = 0x1000, scoped, tag = 'input window, operand 1, single buffered']
    #allocation6 [shape = 's32[1]{0}', space=sflag, size = 0x4, scoped, tag = 'scoped memory for tpu_custom_call.1']
    #allocation7 [shape = 'u8[4096]{0}', space=vmem, size = 0x1000, scoped, tag = 'input window, operand 2, single buffered']
    #allocation8 [shape = 'u8[524288]{0}', space=vmem, size = 0x80000, scoped, tag = 'input window, operand 3, single buffered']
    #allocation9 [shape = 's32[1]{0}', space=sflag, size = 0x4, scoped, tag = 'scoped memory for tpu_custom_call.1']
    #allocation10 [shape = 'u8[4096]{0}', space=vmem, size = 0x1000, scoped, tag = 'input window, operand 5, single buffered']
    #allocation11 [shape = 'u8[4096]{0}', space=vmem, size = 0x1000, scoped, tag = 'input window, operand 6, single buffered']
    #allocation12 [shape = 's32[1]{0}', space=sflag, size = 0x4, scoped, tag = 'scoped memory for tpu_custom_call.1']
    #allocation13 [shape = 'u8[524288]{0}', space=vmem, size = 0x80000, scoped, tag = 'input window, operand 7, single buffered']
    #allocation14 [shape = 'u8[4096]{0}', space=vmem, size = 0x1000, scoped, tag = 'output window, operand 0, single buffered']
    %14 = vsyncpa [#allocation3], 0
    %15 = vsyncpa [#allocation6], 0
    %16 = vsyncpa [#allocation9], 0
    %17 = vsyncpa [#allocation12], 0
    %18 = vsyncpa [#allocation4], 0
    // Predicated region
    $region2: #{tpu_custom_call.1} parent=1 // pred_check
      _
    $region3: #{tpu_custom_call.1} parent=1 // pred_check_branch
      %20 = sbr.rel (0) target = $region5
    $region4: #{tpu_custom_call.1} parent=1 // pred_region
      %22 = vsyncadd [#allocation3], 0
      %s24 = sshll.u32 %s0, 4
      %s25 = int_to_ptr.hbm [resolvable:$true] %s24
      %s26 = sshll.u32 [#allocation2], 4
      %s27 = int_to_ptr.vmem [resolvable:$true] %s26
      %29 = dma.hbm_to_vmem [thread:$0]  %s25, 128, %s27, [#allocation3]
    $region5: #{tpu_custom_call.1} parent=1 // pred_fallthru
      _
    // Predicated region
    $region6: #{tpu_custom_call.1} parent=1 // pred_check
      _
    $region7: #{tpu_custom_call.1} parent=1 // pred_check_branch
      %31 = sbr.rel (0) target = $region9
    $region8: #{tpu_custom_call.1} parent=1 // pred_region
      %33 = vsyncadd [#allocation6], 0
      %s35 = sshll.u32 %s1, 4
      %s36 = int_to_ptr.hbm [resolvable:$true] %s35
      %s37 = sshll.u32 [#allocation5], 4
      %s38 = int_to_ptr.vmem [resolvable:$true] %s37
      %40 = dma.hbm_to_vmem [thread:$0]  %s36, 128, %s38, [#allocation6]
    $region9: #{tpu_custom_call.1} parent=1 // pred_fallthru
      _
    // Predicated region
    $region10: #{tpu_custom_call.1} parent=1 // pred_check
      _
    $region11: #{tpu_custom_call.1} parent=1 // pred_check_branch
      %42 = sbr.rel (0) target = $region13
    $region12: #{tpu_custom_call.1} parent=1 // pred_region
      %44 = vsyncadd [#allocation6], 0
      %s46 = sshll.u32 %s2, 4
      %s47 = int_to_ptr.hbm [resolvable:$true] %s46
      %s48 = sshll.u32 [#allocation7], 4
      %s49 = int_to_ptr.vmem [resolvable:$true] %s48
      %51 = dma.hbm_to_vmem [thread:$0]  %s47, 128, %s49, [#allocation6]
    $region13: #{tpu_custom_call.1} parent=1 // pred_fallthru
      _
    // Predicated region
    $region14: #{tpu_custom_call.1} parent=1 // pred_check
      _
    $region15: #{tpu_custom_call.1} parent=1 // pred_check_branch
      %53 = sbr.rel (0) target = $region17
    $region16: #{tpu_custom_call.1} parent=1 // pred_region
      %55 = vsyncadd [#allocation9], 0
      %s56 = sshll.u32 %s3, 4
      %s57 = int_to_ptr.hbm [resolvable:$true] %s56
      %s58 = sshll.u32 [#allocation8], 4
      %s59 = int_to_ptr.vmem [resolvable:$true] %s58
      %64 = dma.hbm_to_vmem [thread:$0]  %s57, 16384, %s59, [#allocation9], 128, 128, 8
    $region17: #{tpu_custom_call.1} parent=1 // pred_fallthru
      _
    // Predicated region
    $region18: #{tpu_custom_call.1} parent=1 // pred_check
      _
    $region19: #{tpu_custom_call.1} parent=1 // pred_check_branch
      %66 = sbr.rel (0) target = $region21
    $region20: #{tpu_custom_call.1} parent=1 // pred_region
      _
    $region21: #{tpu_custom_call.1} parent=1 // pred_fallthru
      _
    // Predicated region
    $region22: #{tpu_custom_call.1} parent=1 // pred_check
      _
    $region23: #{tpu_custom_call.1} parent=1 // pred_check_branch
      %68 = sbr.rel (0) target = $region25
    $region24: #{tpu_custom_call.1} parent=1 // pred_region
      %70 = vsyncadd [#allocation9], 0
      %s72 = sshll.u32 %s5, 4
      %s73 = int_to_ptr.hbm [resolvable:$true] %s72
      %s74 = sshll.u32 [#allocation10], 4
      %s75 = int_to_ptr.vmem [resolvable:$true] %s74
      %77 = dma.hbm_to_vmem [thread:$0]  %s73, 128, %s75, [#allocation9]
    $region25: #{tpu_custom_call.1} parent=1 // pred_fallthru
      _
    // Predicated region
    $region26: #{tpu_custom_call.1} parent=1 // pred_check
      _
    $region27: #{tpu_custom_call.1} parent=1 // pred_check_branch
      %79 = sbr.rel (0) target = $region29
    $region28: #{tpu_custom_call.1} parent=1 // pred_region
      %81 = vsyncadd [#allocation12], 0
      %s83 = sshll.u32 %s6, 4
      %s84 = int_to_ptr.hbm [resolvable:$true] %s83
      %s85 = sshll.u32 [#allocation11], 4
      %s86 = int_to_ptr.vmem [resolvable:$true] %s85
      %88 = dma.hbm_to_vmem [thread:$0]  %s84, 128, %s86, [#allocation12]
    $region29: #{tpu_custom_call.1} parent=1 // pred_fallthru
      _
    // Predicated region
    $region30: #{tpu_custom_call.1} parent=1 // pred_check
      _
    $region31: #{tpu_custom_call.1} parent=1 // pred_check_branch
      %90 = sbr.rel (0) target = $region33
    $region32: #{tpu_custom_call.1} parent=1 // pred_region
      %92 = vsyncadd [#allocation12], 0
      %s93 = sshll.u32 %s7, 4
      %s94 = int_to_ptr.hbm [resolvable:$true] %s93
      %s95 = sshll.u32 [#allocation13], 4
      %s96 = int_to_ptr.vmem [resolvable:$true] %s95
      %101 = dma.hbm_to_vmem [thread:$0]  %s94, 16384, %s96, [#allocation12], 128, 128, 8
    $region33: #{tpu_custom_call.1} parent=1 // pred_fallthru
      _
    // Predicated region
    $region34: #{tpu_custom_call.1} parent=1 // pred_check
      _
    $region35: #{tpu_custom_call.1} parent=1 // pred_check_branch
      %103 = sbr.rel (0) target = $region37
    $region36: #{tpu_custom_call.1} parent=1 // pred_region
      _
    $region37: #{tpu_custom_call.1} parent=1 // pred_fallthru
      _
    // Predicated region
    $region38: #{tpu_custom_call.1} parent=1 // pred_check
      _
    $region39: #{tpu_custom_call.1} parent=1 // pred_check_branch
      %105 = sbr.rel (0) target = $region41
    $region40: #{tpu_custom_call.1} parent=1 // pred_region
      %107 = dma.done [#allocation3], 128
    $region41: #{tpu_custom_call.1} parent=1 // pred_fallthru
      _
    // Predicated region
    $region42: #{tpu_custom_call.1} parent=1 // pred_check
      _
    $region43: #{tpu_custom_call.1} parent=1 // pred_check_branch
      %109 = sbr.rel (0) target = $region45
    $region44: #{tpu_custom_call.1} parent=1 // pred_region
      %111 = dma.done [#allocation6], 128
    $region45: #{tpu_custom_call.1} parent=1 // pred_fallthru
      _
    // Predicated region
    $region46: #{tpu_custom_call.1} parent=1 // pred_check
      _
    $region47: #{tpu_custom_call.1} parent=1 // pred_check_branch
      %113 = sbr.rel (0) target = $region49
    $region48: #{tpu_custom_call.1} parent=1 // pred_region
      %115 = dma.done [#allocation6], 128
    $region49: #{tpu_custom_call.1} parent=1 // pred_fallthru
      _
    // Predicated region
    $region50: #{tpu_custom_call.1} parent=1 // pred_check
      _
    $region51: #{tpu_custom_call.1} parent=1 // pred_check_branch
      %117 = sbr.rel (0) target = $region53
    $region52: #{tpu_custom_call.1} parent=1 // pred_region
      %119 = dma.done [#allocation9], 16384
    $region53: #{tpu_custom_call.1} parent=1 // pred_fallthru
      _
    // Predicated region
    $region54: #{tpu_custom_call.1} parent=1 // pred_check
      _
    $region55: #{tpu_custom_call.1} parent=1 // pred_check_branch
      %121 = sbr.rel (0) target = $region57
    $region56: #{tpu_custom_call.1} parent=1 // pred_region
      %123 = dma.done [#allocation9], 128
    $region57: #{tpu_custom_call.1} parent=1 // pred_fallthru
      _
    // Predicated region
    $region58: #{tpu_custom_call.1} parent=1 // pred_check
      _
    $region59: #{tpu_custom_call.1} parent=1 // pred_check_branch
      %125 = sbr.rel (0) target = $region61
    $region60: #{tpu_custom_call.1} parent=1 // pred_region
      %127 = dma.done [#allocation12], 128
    $region61: #{tpu_custom_call.1} parent=1 // pred_fallthru
      _
    // Predicated region
    $region62: #{tpu_custom_call.1} parent=1 // pred_check
      _
    $region63: #{tpu_custom_call.1} parent=1 // pred_check_branch
      %129 = sbr.rel (0) target = $region65
    $region64: #{tpu_custom_call.1} parent=1 // pred_region
      %131 = dma.done [#allocation12], 16384
    $region65: #{tpu_custom_call.1} parent=1 // pred_fallthru
      _
    %v132 = vld [vmem:[#allocation2] sm:$0xff]
    %v133 = vld [vmem:[#allocation5] sm:$0xff]
    %v134 = vld [vmem:[#allocation7] sm:$0xff]
    %v136 = vperm.slane %v133, 0
    %v137 = vperm.slane %v133, 1
    %v138 = vperm.slane %v133, 2
    %v139 = vperm.slane %v133, 3
    %v140 = vperm.slane %v133, 4
    %v141 = vperm.slane %v133, 5
    %v142 = vperm.slane %v133, 6
    %v143 = vperm.slane %v133, 7
    %v152 = vsub.f32 %v132, %v136
    %v153 = vsub.f32 %v132, %v137
    %v154 = vsub.f32 %v132, %v138
    %v155 = vsub.f32 %v132, %v139
    %v156 = vsub.f32 %v132, %v140
    %v157 = vsub.f32 %v132, %v141
    %v158 = vsub.f32 %v132, %v142
    %v159 = vsub.f32 %v132, %v143
    %v160 = vmax.f32 %v152, 0.0
    %v161 = vmax.f32 %v153, 0.0
    %v162 = vmax.f32 %v154, 0.0
    %v163 = vmax.f32 %v155, 0.0
    %v164 = vmax.f32 %v156, 0.0
    %v165 = vmax.f32 %v157, 0.0
    %v166 = vmax.f32 %v158, 0.0
    %v167 = vmax.f32 %v159, 0.0
    %v169 = vperm.slane %v134, 0
    %v170 = vperm.slane %v134, 1
    %v171 = vperm.slane %v134, 2
    %v172 = vperm.slane %v134, 3
    %v173 = vperm.slane %v134, 4
    %v174 = vperm.slane %v134, 5
    %v175 = vperm.slane %v134, 6
    %v176 = vperm.slane %v134, 7
    %v185 = vsub.f32 %v169, %v132
    %v186 = vsub.f32 %v170, %v132
    %v187 = vsub.f32 %v171, %v132
    %v188 = vsub.f32 %v172, %v132
    %v189 = vsub.f32 %v173, %v132
    %v190 = vsub.f32 %v174, %v132
    %v191 = vsub.f32 %v175, %v132
    %v192 = vsub.f32 %v176, %v132
    %v193 = vmax.f32 %v185, 0.0
    %v194 = vmax.f32 %v186, 0.0
    %v195 = vmax.f32 %v187, 0.0
    %v196 = vmax.f32 %v188, 0.0
    %v197 = vmax.f32 %v189, 0.0
    %v198 = vmax.f32 %v190, 0.0
    %v199 = vmax.f32 %v191, 0.0
    %v200 = vmax.f32 %v192, 0.0
    %v201 = vmul.f32 %v160, %v193
    %v202 = vmul.f32 %v161, %v194
    %v203 = vmul.f32 %v162, %v195
    %v204 = vmul.f32 %v163, %v196
    %v205 = vmul.f32 %v164, %v197
    %v206 = vmul.f32 %v165, %v198
    %v207 = vmul.f32 %v166, %v199
    %v208 = vmul.f32 %v167, %v200
    %v209 = vmul.f32 %v201, %v201
    %v210 = vmul.f32 %v202, %v202
    %v211 = vmul.f32 %v203, %v203
    %v212 = vmul.f32 %v204, %v204
    %v213 = vmul.f32 %v205, %v205
    %v214 = vmul.f32 %v206, %v206
    %v215 = vmul.f32 %v207, %v207
    %v216 = vmul.f32 %v208, %v208
    %v217 = vld [vmem:[#allocation8] sm:$0xff]
    %v218 = vld [vmem:[#allocation8 + $0x8] sm:$0xff]
    %v219 = vld [vmem:[#allocation8 + $0x10] sm:$0xff]
    %v220 = vld [vmem:[#allocation8 + $0x18] sm:$0xff]
    %v221 = vld [vmem:[#allocation8 + $0x20] sm:$0xff]
    %v222 = vld [vmem:[#allocation8 + $0x28] sm:$0xff]
    %v223 = vld [vmem:[#allocation8 + $0x30] sm:$0xff]
    %v224 = vld [vmem:[#allocation8 + $0x38] sm:$0xff]
    %v225 = vld [vmem:[#allocation8 + $0x40] sm:$0xff]
    %v226 = vld [vmem:[#allocation8 + $0x48] sm:$0xff]
    %v227 = vld [vmem:[#allocation8 + $0x50] sm:$0xff]
    %v228 = vld [vmem:[#allocation8 + $0x58] sm:$0xff]
    %v229 = vld [vmem:[#allocation8 + $0x60] sm:$0xff]
    %v230 = vld [vmem:[#allocation8 + $0x68] sm:$0xff]
    %v231 = vld [vmem:[#allocation8 + $0x70] sm:$0xff]
    %v232 = vld [vmem:[#allocation8 + $0x78] sm:$0xff]
    %v233 = vld [vmem:[#allocation8 + $0x80] sm:$0xff]
    %v234 = vld [vmem:[#allocation8 + $0x88] sm:$0xff]
    %v235 = vld [vmem:[#allocation8 + $0x90] sm:$0xff]
    %v236 = vld [vmem:[#allocation8 + $0x98] sm:$0xff]
    %v237 = vld [vmem:[#allocation8 + $0xa0] sm:$0xff]
    %v238 = vld [vmem:[#allocation8 + $0xa8] sm:$0xff]
    %v239 = vld [vmem:[#allocation8 + $0xb0] sm:$0xff]
    %v240 = vld [vmem:[#allocation8 + $0xb8] sm:$0xff]
    %v241 = vld [vmem:[#allocation8 + $0xc0] sm:$0xff]
    %v242 = vld [vmem:[#allocation8 + $0xc8] sm:$0xff]
    %v243 = vld [vmem:[#allocation8 + $0xd0] sm:$0xff]
    %v244 = vld [vmem:[#allocation8 + $0xd8] sm:$0xff]
    %v245 = vld [vmem:[#allocation8 + $0xe0] sm:$0xff]
    %v246 = vld [vmem:[#allocation8 + $0xe8] sm:$0xff]
    %v247 = vld [vmem:[#allocation8 + $0xf0] sm:$0xff]
    %v248 = vld [vmem:[#allocation8 + $0xf8] sm:$0xff]
    %v249 = vld [vmem:[#allocation8 + $0x100] sm:$0xff]
    %v250 = vld [vmem:[#allocation8 + $0x108] sm:$0xff]
    %v251 = vld [vmem:[#allocation8 + $0x110] sm:$0xff]
    %v252 = vld [vmem:[#allocation8 + $0x118] sm:$0xff]
    %v253 = vld [vmem:[#allocation8 + $0x120] sm:$0xff]
    %v254 = vld [vmem:[#allocation8 + $0x128] sm:$0xff]
    %v255 = vld [vmem:[#allocation8 + $0x130] sm:$0xff]
    %v256 = vld [vmem:[#allocation8 + $0x138] sm:$0xff]
    %v257 = vld [vmem:[#allocation8 + $0x140] sm:$0xff]
    %v258 = vld [vmem:[#allocation8 + $0x148] sm:$0xff]
    %v259 = vld [vmem:[#allocation8 + $0x150] sm:$0xff]
    %v260 = vld [vmem:[#allocation8 + $0x158] sm:$0xff]
    %v261 = vld [vmem:[#allocation8 + $0x160] sm:$0xff]
    %v262 = vld [vmem:[#allocation8 + $0x168] sm:$0xff]
    %v263 = vld [vmem:[#allocation8 + $0x170] sm:$0xff]
    %v264 = vld [vmem:[#allocation8 + $0x178] sm:$0xff]
    %v265 = vld [vmem:[#allocation8 + $0x180] sm:$0xff]
    %v266 = vld [vmem:[#allocation8 + $0x188] sm:$0xff]
    %v267 = vld [vmem:[#allocation8 + $0x190] sm:$0xff]
    %v268 = vld [vmem:[#allocation8 + $0x198] sm:$0xff]
    %v269 = vld [vmem:[#allocation8 + $0x1a0] sm:$0xff]
    %v270 = vld [vmem:[#allocation8 + $0x1a8] sm:$0xff]
    %v271 = vld [vmem:[#allocation8 + $0x1b0] sm:$0xff]
    %v272 = vld [vmem:[#allocation8 + $0x1b8] sm:$0xff]
    %v273 = vld [vmem:[#allocation8 + $0x1c0] sm:$0xff]
    %v274 = vld [vmem:[#allocation8 + $0x1c8] sm:$0xff]
    %v275 = vld [vmem:[#allocation8 + $0x1d0] sm:$0xff]
    %v276 = vld [vmem:[#allocation8 + $0x1d8] sm:$0xff]
    %v277 = vld [vmem:[#allocation8 + $0x1e0] sm:$0xff]
    %v278 = vld [vmem:[#allocation8 + $0x1e8] sm:$0xff]
    %v279 = vld [vmem:[#allocation8 + $0x1f0] sm:$0xff]
    %v280 = vld [vmem:[#allocation8 + $0x1f8] sm:$0xff]
    %v281 = vld [vmem:[#allocation8 + $0x200] sm:$0xff]
    %v282 = vld [vmem:[#allocation8 + $0x208] sm:$0xff]
    %v283 = vld [vmem:[#allocation8 + $0x210] sm:$0xff]
    %v284 = vld [vmem:[#allocation8 + $0x218] sm:$0xff]
    %v285 = vld [vmem:[#allocation8 + $0x220] sm:$0xff]
    %v286 = vld [vmem:[#allocation8 + $0x228] sm:$0xff]
    %v287 = vld [vmem:[#allocation8 + $0x230] sm:$0xff]
    %v288 = vld [vmem:[#allocation8 + $0x238] sm:$0xff]
    %v289 = vld [vmem:[#allocation8 + $0x240] sm:$0xff]
    %v290 = vld [vmem:[#allocation8 + $0x248] sm:$0xff]
    %v291 = vld [vmem:[#allocation8 + $0x250] sm:$0xff]
    %v292 = vld [vmem:[#allocation8 + $0x258] sm:$0xff]
    %v293 = vld [vmem:[#allocation8 + $0x260] sm:$0xff]
    %v294 = vld [vmem:[#allocation8 + $0x268] sm:$0xff]
    %v295 = vld [vmem:[#allocation8 + $0x270] sm:$0xff]
    %v296 = vld [vmem:[#allocation8 + $0x278] sm:$0xff]
    %v297 = vld [vmem:[#allocation8 + $0x280] sm:$0xff]
    %v298 = vld [vmem:[#allocation8 + $0x288] sm:$0xff]
    %v299 = vld [vmem:[#allocation8 + $0x290] sm:$0xff]
    %v300 = vld [vmem:[#allocation8 + $0x298] sm:$0xff]
    %v301 = vld [vmem:[#allocation8 + $0x2a0] sm:$0xff]
    %v302 = vld [vmem:[#allocation8 + $0x2a8] sm:$0xff]
    %v303 = vld [vmem:[#allocation8 + $0x2b0] sm:$0xff]
    %v304 = vld [vmem:[#allocation8 + $0x2b8] sm:$0xff]
    %v305 = vld [vmem:[#allocation8 + $0x2c0] sm:$0xff]
    %v306 = vld [vmem:[#allocation8 + $0x2c8] sm:$0xff]
    %v307 = vld [vmem:[#allocation8 + $0x2d0] sm:$0xff]
    %v308 = vld [vmem:[#allocation8 + $0x2d8] sm:$0xff]
    %v309 = vld [vmem:[#allocation8 + $0x2e0] sm:$0xff]
    %v310 = vld [vmem:[#allocation8 + $0x2e8] sm:$0xff]
    %v311 = vld [vmem:[#allocation8 + $0x2f0] sm:$0xff]
    %v312 = vld [vmem:[#allocation8 + $0x2f8] sm:$0xff]
    %v313 = vld [vmem:[#allocation8 + $0x300] sm:$0xff]
    %v314 = vld [vmem:[#allocation8 + $0x308] sm:$0xff]
    %v315 = vld [vmem:[#allocation8 + $0x310] sm:$0xff]
    %v316 = vld [vmem:[#allocation8 + $0x318] sm:$0xff]
    %v317 = vld [vmem:[#allocation8 + $0x320] sm:$0xff]
    %v318 = vld [vmem:[#allocation8 + $0x328] sm:$0xff]
    %v319 = vld [vmem:[#allocation8 + $0x330] sm:$0xff]
    %v320 = vld [vmem:[#allocation8 + $0x338] sm:$0xff]
    %v321 = vld [vmem:[#allocation8 + $0x340] sm:$0xff]
    %v322 = vld [vmem:[#allocation8 + $0x348] sm:$0xff]
    %v323 = vld [vmem:[#allocation8 + $0x350] sm:$0xff]
    %v324 = vld [vmem:[#allocation8 + $0x358] sm:$0xff]
    %v325 = vld [vmem:[#allocation8 + $0x360] sm:$0xff]
    %v326 = vld [vmem:[#allocation8 + $0x368] sm:$0xff]
    %v327 = vld [vmem:[#allocation8 + $0x370] sm:$0xff]
    %v328 = vld [vmem:[#allocation8 + $0x378] sm:$0xff]
    %v329 = vld [vmem:[#allocation8 + $0x380] sm:$0xff]
    %v330 = vld [vmem:[#allocation8 + $0x388] sm:$0xff]
    %v331 = vld [vmem:[#allocation8 + $0x390] sm:$0xff]
    %v332 = vld [vmem:[#allocation8 + $0x398] sm:$0xff]
    %v333 = vld [vmem:[#allocation8 + $0x3a0] sm:$0xff]
    %v334 = vld [vmem:[#allocation8 + $0x3a8] sm:$0xff]
    %v335 = vld [vmem:[#allocation8 + $0x3b0] sm:$0xff]
    %v336 = vld [vmem:[#allocation8 + $0x3b8] sm:$0xff]
    %v337 = vld [vmem:[#allocation8 + $0x3c0] sm:$0xff]
    %v338 = vld [vmem:[#allocation8 + $0x3c8] sm:$0xff]
    %v339 = vld [vmem:[#allocation8 + $0x3d0] sm:$0xff]
    %v340 = vld [vmem:[#allocation8 + $0x3d8] sm:$0xff]
    %v341 = vld [vmem:[#allocation8 + $0x3e0] sm:$0xff]
    %v342 = vld [vmem:[#allocation8 + $0x3e8] sm:$0xff]
    %v343 = vld [vmem:[#allocation8 + $0x3f0] sm:$0xff]
    %v344 = vld [vmem:[#allocation8 + $0x3f8] sm:$0xff]
    %v345 = vld [vmem:[%s4] sm:$0x1]
    %v347 = vperm.slane %v345, 0
    %349 = vmatpush.msra.mxu0 %v232
    %350 = vmatpush.msra.mxu0 %v231
    %351 = vmatpush.msra.mxu0 %v230
    %352 = vmatpush.msra.mxu0 %v229
    %353 = vmatpush.msra.mxu0 %v228
    %354 = vmatpush.msra.mxu0 %v227
    %355 = vmatpush.msra.mxu0 %v226
    %356 = vmatpush.msra.mxu0 %v225
    %357 = vmatpush.msra.mxu0 %v224
    %358 = vmatpush.msra.mxu0 %v223
    %359 = vmatpush.msra.mxu0 %v222
    %360 = vmatpush.msra.mxu0 %v221
    %361 = vmatpush.msra.mxu0 %v220
    %362 = vmatpush.msra.mxu0 %v219
    %363 = vmatpush.msra.mxu0 %v218
    %364 = vmatpush.msra.mxu0 %v217
    %365 = vmatmul.f32.gmra.mxu0 %v209
    %v366 = vpop.f32.mrf.mxu0
    %v367 = vadd.f32 %v347, %v366
    %368 = vdwg.mxu0
    %369 = vmatpush.msra.mxu0 %v248
    %370 = vmatpush.msra.mxu0 %v247
    %371 = vmatpush.msra.mxu0 %v246
    %372 = vmatpush.msra.mxu0 %v245
    %373 = vmatpush.msra.mxu0 %v244
    %374 = vmatpush.msra.mxu0 %v243
    %375 = vmatpush.msra.mxu0 %v242
    %376 = vmatpush.msra.mxu0 %v241
    %377 = vmatpush.msra.mxu0 %v240
    %378 = vmatpush.msra.mxu0 %v239
    %379 = vmatpush.msra.mxu0 %v238
    %380 = vmatpush.msra.mxu0 %v237
    %381 = vmatpush.msra.mxu0 %v236
    %382 = vmatpush.msra.mxu0 %v235
    %383 = vmatpush.msra.mxu0 %v234
    %384 = vmatpush.msra.mxu0 %v233
    %385 = vmatmul.f32.gmra.mxu0 %v210
    %v386 = vpop.f32.mrf.mxu0
    %v387 = vadd.f32 %v367, %v386
    %388 = vdwg.mxu0
    %389 = vmatpush.msra.mxu0 %v264
    %390 = vmatpush.msra.mxu0 %v263
    %391 = vmatpush.msra.mxu0 %v262
    %392 = vmatpush.msra.mxu0 %v261
    %393 = vmatpush.msra.mxu0 %v260
    %394 = vmatpush.msra.mxu0 %v259
    %395 = vmatpush.msra.mxu0 %v258
    %396 = vmatpush.msra.mxu0 %v257
    %397 = vmatpush.msra.mxu0 %v256
    %398 = vmatpush.msra.mxu0 %v255
    %399 = vmatpush.msra.mxu0 %v254
    %400 = vmatpush.msra.mxu0 %v253
    %401 = vmatpush.msra.mxu0 %v252
    %402 = vmatpush.msra.mxu0 %v251
    %403 = vmatpush.msra.mxu0 %v250
    %404 = vmatpush.msra.mxu0 %v249
    %405 = vmatmul.f32.gmra.mxu0 %v211
    %v406 = vpop.f32.mrf.mxu0
    %v407 = vadd.f32 %v387, %v406
    %408 = vdwg.mxu0
    %409 = vmatpush.msra.mxu0 %v280
    %410 = vmatpush.msra.mxu0 %v279
    %411 = vmatpush.msra.mxu0 %v278
    %412 = vmatpush.msra.mxu0 %v277
    %413 = vmatpush.msra.mxu0 %v276
    %414 = vmatpush.msra.mxu0 %v275
    %415 = vmatpush.msra.mxu0 %v274
    %416 = vmatpush.msra.mxu0 %v273
    %417 = vmatpush.msra.mxu0 %v272
    %418 = vmatpush.msra.mxu0 %v271
    %419 = vmatpush.msra.mxu0 %v270
    %420 = vmatpush.msra.mxu0 %v269
    %421 = vmatpush.msra.mxu0 %v268
    %422 = vmatpush.msra.mxu0 %v267
    %423 = vmatpush.msra.mxu0 %v266
    %424 = vmatpush.msra.mxu0 %v265
    %425 = vmatmul.f32.gmra.mxu0 %v212
    %v426 = vpop.f32.mrf.mxu0
    %v427 = vadd.f32 %v407, %v426
    %428 = vdwg.mxu0
    %429 = vmatpush.msra.mxu0 %v296
    %430 = vmatpush.msra.mxu0 %v295
    %431 = vmatpush.msra.mxu0 %v294
    %432 = vmatpush.msra.mxu0 %v293
    %433 = vmatpush.msra.mxu0 %v292
    %434 = vmatpush.msra.mxu0 %v291
    %435 = vmatpush.msra.mxu0 %v290
    %436 = vmatpush.msra.mxu0 %v289
    %437 = vmatpush.msra.mxu0 %v288
    %438 = vmatpush.msra.mxu0 %v287
    %439 = vmatpush.msra.mxu0 %v286
    %440 = vmatpush.msra.mxu0 %v285
    %441 = vmatpush.msra.mxu0 %v284
    %442 = vmatpush.msra.mxu0 %v283
    %443 = vmatpush.msra.mxu0 %v282
    %444 = vmatpush.msra.mxu0 %v281
    %445 = vmatmul.f32.gmra.mxu0 %v213
    %v446 = vpop.f32.mrf.mxu0
    %v447 = vadd.f32 %v427, %v446
    %448 = vdwg.mxu0
    %449 = vmatpush.msra.mxu0 %v312
    %450 = vmatpush.msra.mxu0 %v311
    %451 = vmatpush.msra.mxu0 %v310
    %452 = vmatpush.msra.mxu0 %v309
    %453 = vmatpush.msra.mxu0 %v308
    %454 = vmatpush.msra.mxu0 %v307
    %455 = vmatpush.msra.mxu0 %v306
    %456 = vmatpush.msra.mxu0 %v305
    %457 = vmatpush.msra.mxu0 %v304
    %458 = vmatpush.msra.mxu0 %v303
    %459 = vmatpush.msra.mxu0 %v302
    %460 = vmatpush.msra.mxu0 %v301
    %461 = vmatpush.msra.mxu0 %v300
    %462 = vmatpush.msra.mxu0 %v299
    %463 = vmatpush.msra.mxu0 %v298
    %464 = vmatpush.msra.mxu0 %v297
    %465 = vmatmul.f32.gmra.mxu0 %v214
    %v466 = vpop.f32.mrf.mxu0
    %v467 = vadd.f32 %v447, %v466
    %468 = vdwg.mxu0
    %469 = vmatpush.msra.mxu0 %v328
    %470 = vmatpush.msra.mxu0 %v327
    %471 = vmatpush.msra.mxu0 %v326
    %472 = vmatpush.msra.mxu0 %v325
    %473 = vmatpush.msra.mxu0 %v324
    %474 = vmatpush.msra.mxu0 %v323
    %475 = vmatpush.msra.mxu0 %v322
    %476 = vmatpush.msra.mxu0 %v321
    %477 = vmatpush.msra.mxu0 %v320
    %478 = vmatpush.msra.mxu0 %v319
    %479 = vmatpush.msra.mxu0 %v318
    %480 = vmatpush.msra.mxu0 %v317
    %481 = vmatpush.msra.mxu0 %v316
    %482 = vmatpush.msra.mxu0 %v315
    %483 = vmatpush.msra.mxu0 %v314
    %484 = vmatpush.msra.mxu0 %v313
    %485 = vmatmul.f32.gmra.mxu0 %v215
    %v486 = vpop.f32.mrf.mxu0
    %v487 = vadd.f32 %v467, %v486
    %488 = vdwg.mxu0
    %489 = vmatpush.msra.mxu0 %v344
    %490 = vmatpush.msra.mxu0 %v343
    %491 = vmatpush.msra.mxu0 %v342
    %492 = vmatpush.msra.mxu0 %v341
    %493 = vmatpush.msra.mxu0 %v340
    %494 = vmatpush.msra.mxu0 %v339
    %495 = vmatpush.msra.mxu0 %v338
    %496 = vmatpush.msra.mxu0 %v337
    %497 = vmatpush.msra.mxu0 %v336
    %498 = vmatpush.msra.mxu0 %v335
    %499 = vmatpush.msra.mxu0 %v334
    %500 = vmatpush.msra.mxu0 %v333
    %501 = vmatpush.msra.mxu0 %v332
    %502 = vmatpush.msra.mxu0 %v331
    %503 = vmatpush.msra.mxu0 %v330
    %504 = vmatpush.msra.mxu0 %v329
    %505 = vmatmul.f32.gmra.mxu0 %v216
    %v506 = vpop.f32.mrf.mxu0
    %v507 = vadd.f32 %v487, %v506
    %508 = vdwg.mxu0
    %v509 = vld [vmem:[#allocation10] sm:$0xff]
    %v510 = vld [vmem:[#allocation11] sm:$0xff]
    %v512 = vperm.slane %v509, 0
    %v513 = vperm.slane %v509, 1
    %v514 = vperm.slane %v509, 2
    %v515 = vperm.slane %v509, 3
    %v516 = vperm.slane %v509, 4
    %v517 = vperm.slane %v509, 5
    %v518 = vperm.slane %v509, 6
    %v519 = vperm.slane %v509, 7
    %v528 = vsub.f32 %v507, %v512
    %v529 = vsub.f32 %v507, %v513
    %v530 = vsub.f32 %v507, %v514
    %v531 = vsub.f32 %v507, %v515
    %v532 = vsub.f32 %v507, %v516
    %v533 = vsub.f32 %v507, %v517
    %v534 = vsub.f32 %v507, %v518
    %v535 = vsub.f32 %v507, %v519
    %v536 = vmax.f32 %v528, 0.0
    %v537 = vmax.f32 %v529, 0.0
    %v538 = vmax.f32 %v530, 0.0
    %v539 = vmax.f32 %v531, 0.0
    %v540 = vmax.f32 %v532, 0.0
    %v541 = vmax.f32 %v533, 0.0
    %v542 = vmax.f32 %v534, 0.0
    %v543 = vmax.f32 %v535, 0.0
    %v545 = vperm.slane %v510, 0
    %v546 = vperm.slane %v510, 1
    %v547 = vperm.slane %v510, 2
    %v548 = vperm.slane %v510, 3
    %v549 = vperm.slane %v510, 4
    %v550 = vperm.slane %v510, 5
    %v551 = vperm.slane %v510, 6
    %v552 = vperm.slane %v510, 7
    %v561 = vsub.f32 %v545, %v507
    %v562 = vsub.f32 %v546, %v507
    %v563 = vsub.f32 %v547, %v507
    %v564 = vsub.f32 %v548, %v507
    %v565 = vsub.f32 %v549, %v507
    %v566 = vsub.f32 %v550, %v507
    %v567 = vsub.f32 %v551, %v507
    %v568 = vsub.f32 %v552, %v507
    %v569 = vmax.f32 %v561, 0.0
    %v570 = vmax.f32 %v562, 0.0
    %v571 = vmax.f32 %v563, 0.0
    %v572 = vmax.f32 %v564, 0.0
    %v573 = vmax.f32 %v565, 0.0
    %v574 = vmax.f32 %v566, 0.0
    %v575 = vmax.f32 %v567, 0.0
    %v576 = vmax.f32 %v568, 0.0
    %v577 = vmul.f32 %v536, %v569
    %v578 = vmul.f32 %v537, %v570
    %v579 = vmul.f32 %v538, %v571
    %v580 = vmul.f32 %v539, %v572
    %v581 = vmul.f32 %v540, %v573
    %v582 = vmul.f32 %v541, %v574
    %v583 = vmul.f32 %v542, %v575
    %v584 = vmul.f32 %v543, %v576
    %v585 = vmul.f32 %v577, %v577
    %v586 = vmul.f32 %v578, %v578
    %v587 = vmul.f32 %v579, %v579
    %v588 = vmul.f32 %v580, %v580
    %v589 = vmul.f32 %v581, %v581
    %v590 = vmul.f32 %v582, %v582
    %v591 = vmul.f32 %v583, %v583
    %v592 = vmul.f32 %v584, %v584
    %v593 = vld [vmem:[#allocation13] sm:$0xff]
    %v594 = vld [vmem:[#allocation13 + $0x8] sm:$0xff]
    %v595 = vld [vmem:[#allocation13 + $0x10] sm:$0xff]
    %v596 = vld [vmem:[#allocation13 + $0x18] sm:$0xff]
    %v597 = vld [vmem:[#allocation13 + $0x20] sm:$0xff]
    %v598 = vld [vmem:[#allocation13 + $0x28] sm:$0xff]
    %v599 = vld [vmem:[#allocation13 + $0x30] sm:$0xff]
    %v600 = vld [vmem:[#allocation13 + $0x38] sm:$0xff]
    %v601 = vld [vmem:[#allocation13 + $0x40] sm:$0xff]
    %v602 = vld [vmem:[#allocation13 + $0x48] sm:$0xff]
    %v603 = vld [vmem:[#allocation13 + $0x50] sm:$0xff]
    %v604 = vld [vmem:[#allocation13 + $0x58] sm:$0xff]
    %v605 = vld [vmem:[#allocation13 + $0x60] sm:$0xff]
    %v606 = vld [vmem:[#allocation13 + $0x68] sm:$0xff]
    %v607 = vld [vmem:[#allocation13 + $0x70] sm:$0xff]
    %v608 = vld [vmem:[#allocation13 + $0x78] sm:$0xff]
    %v609 = vld [vmem:[#allocation13 + $0x80] sm:$0xff]
    %v610 = vld [vmem:[#allocation13 + $0x88] sm:$0xff]
    %v611 = vld [vmem:[#allocation13 + $0x90] sm:$0xff]
    %v612 = vld [vmem:[#allocation13 + $0x98] sm:$0xff]
    %v613 = vld [vmem:[#allocation13 + $0xa0] sm:$0xff]
    %v614 = vld [vmem:[#allocation13 + $0xa8] sm:$0xff]
    %v615 = vld [vmem:[#allocation13 + $0xb0] sm:$0xff]
    %v616 = vld [vmem:[#allocation13 + $0xb8] sm:$0xff]
    %v617 = vld [vmem:[#allocation13 + $0xc0] sm:$0xff]
    %v618 = vld [vmem:[#allocation13 + $0xc8] sm:$0xff]
    %v619 = vld [vmem:[#allocation13 + $0xd0] sm:$0xff]
    %v620 = vld [vmem:[#allocation13 + $0xd8] sm:$0xff]
    %v621 = vld [vmem:[#allocation13 + $0xe0] sm:$0xff]
    %v622 = vld [vmem:[#allocation13 + $0xe8] sm:$0xff]
    %v623 = vld [vmem:[#allocation13 + $0xf0] sm:$0xff]
    %v624 = vld [vmem:[#allocation13 + $0xf8] sm:$0xff]
    %v625 = vld [vmem:[#allocation13 + $0x100] sm:$0xff]
    %v626 = vld [vmem:[#allocation13 + $0x108] sm:$0xff]
    %v627 = vld [vmem:[#allocation13 + $0x110] sm:$0xff]
    %v628 = vld [vmem:[#allocation13 + $0x118] sm:$0xff]
    %v629 = vld [vmem:[#allocation13 + $0x120] sm:$0xff]
    %v630 = vld [vmem:[#allocation13 + $0x128] sm:$0xff]
    %v631 = vld [vmem:[#allocation13 + $0x130] sm:$0xff]
    %v632 = vld [vmem:[#allocation13 + $0x138] sm:$0xff]
    %v633 = vld [vmem:[#allocation13 + $0x140] sm:$0xff]
    %v634 = vld [vmem:[#allocation13 + $0x148] sm:$0xff]
    %v635 = vld [vmem:[#allocation13 + $0x150] sm:$0xff]
    %v636 = vld [vmem:[#allocation13 + $0x158] sm:$0xff]
    %v637 = vld [vmem:[#allocation13 + $0x160] sm:$0xff]
    %v638 = vld [vmem:[#allocation13 + $0x168] sm:$0xff]
    %v639 = vld [vmem:[#allocation13 + $0x170] sm:$0xff]
    %v640 = vld [vmem:[#allocation13 + $0x178] sm:$0xff]
    %v641 = vld [vmem:[#allocation13 + $0x180] sm:$0xff]
    %v642 = vld [vmem:[#allocation13 + $0x188] sm:$0xff]
    %v643 = vld [vmem:[#allocation13 + $0x190] sm:$0xff]
    %v644 = vld [vmem:[#allocation13 + $0x198] sm:$0xff]
    %v645 = vld [vmem:[#allocation13 + $0x1a0] sm:$0xff]
    %v646 = vld [vmem:[#allocation13 + $0x1a8] sm:$0xff]
    %v647 = vld [vmem:[#allocation13 + $0x1b0] sm:$0xff]
    %v648 = vld [vmem:[#allocation13 + $0x1b8] sm:$0xff]
    %v649 = vld [vmem:[#allocation13 + $0x1c0] sm:$0xff]
    %v650 = vld [vmem:[#allocation13 + $0x1c8] sm:$0xff]
    %v651 = vld [vmem:[#allocation13 + $0x1d0] sm:$0xff]
    %v652 = vld [vmem:[#allocation13 + $0x1d8] sm:$0xff]
    %v653 = vld [vmem:[#allocation13 + $0x1e0] sm:$0xff]
    %v654 = vld [vmem:[#allocation13 + $0x1e8] sm:$0xff]
    %v655 = vld [vmem:[#allocation13 + $0x1f0] sm:$0xff]
    %v656 = vld [vmem:[#allocation13 + $0x1f8] sm:$0xff]
    %v657 = vld [vmem:[#allocation13 + $0x200] sm:$0xff]
    %v658 = vld [vmem:[#allocation13 + $0x208] sm:$0xff]
    %v659 = vld [vmem:[#allocation13 + $0x210] sm:$0xff]
    %v660 = vld [vmem:[#allocation13 + $0x218] sm:$0xff]
    %v661 = vld [vmem:[#allocation13 + $0x220] sm:$0xff]
    %v662 = vld [vmem:[#allocation13 + $0x228] sm:$0xff]
    %v663 = vld [vmem:[#allocation13 + $0x230] sm:$0xff]
    %v664 = vld [vmem:[#allocation13 + $0x238] sm:$0xff]
    %v665 = vld [vmem:[#allocation13 + $0x240] sm:$0xff]
    %v666 = vld [vmem:[#allocation13 + $0x248] sm:$0xff]
    %v667 = vld [vmem:[#allocation13 + $0x250] sm:$0xff]
    %v668 = vld [vmem:[#allocation13 + $0x258] sm:$0xff]
    %v669 = vld [vmem:[#allocation13 + $0x260] sm:$0xff]
    %v670 = vld [vmem:[#allocation13 + $0x268] sm:$0xff]
    %v671 = vld [vmem:[#allocation13 + $0x270] sm:$0xff]
    %v672 = vld [vmem:[#allocation13 + $0x278] sm:$0xff]
    %v673 = vld [vmem:[#allocation13 + $0x280] sm:$0xff]
    %v674 = vld [vmem:[#allocation13 + $0x288] sm:$0xff]
    %v675 = vld [vmem:[#allocation13 + $0x290] sm:$0xff]
    %v676 = vld [vmem:[#allocation13 + $0x298] sm:$0xff]
    %v677 = vld [vmem:[#allocation13 + $0x2a0] sm:$0xff]
    %v678 = vld [vmem:[#allocation13 + $0x2a8] sm:$0xff]
    %v679 = vld [vmem:[#allocation13 + $0x2b0] sm:$0xff]
    %v680 = vld [vmem:[#allocation13 + $0x2b8] sm:$0xff]
    %v681 = vld [vmem:[#allocation13 + $0x2c0] sm:$0xff]
    %v682 = vld [vmem:[#allocation13 + $0x2c8] sm:$0xff]
    %v683 = vld [vmem:[#allocation13 + $0x2d0] sm:$0xff]
    %v684 = vld [vmem:[#allocation13 + $0x2d8] sm:$0xff]
    %v685 = vld [vmem:[#allocation13 + $0x2e0] sm:$0xff]
    %v686 = vld [vmem:[#allocation13 + $0x2e8] sm:$0xff]
    %v687 = vld [vmem:[#allocation13 + $0x2f0] sm:$0xff]
    %v688 = vld [vmem:[#allocation13 + $0x2f8] sm:$0xff]
    %v689 = vld [vmem:[#allocation13 + $0x300] sm:$0xff]
    %v690 = vld [vmem:[#allocation13 + $0x308] sm:$0xff]
    %v691 = vld [vmem:[#allocation13 + $0x310] sm:$0xff]
    %v692 = vld [vmem:[#allocation13 + $0x318] sm:$0xff]
    %v693 = vld [vmem:[#allocation13 + $0x320] sm:$0xff]
    %v694 = vld [vmem:[#allocation13 + $0x328] sm:$0xff]
    %v695 = vld [vmem:[#allocation13 + $0x330] sm:$0xff]
    %v696 = vld [vmem:[#allocation13 + $0x338] sm:$0xff]
    %v697 = vld [vmem:[#allocation13 + $0x340] sm:$0xff]
    %v698 = vld [vmem:[#allocation13 + $0x348] sm:$0xff]
    %v699 = vld [vmem:[#allocation13 + $0x350] sm:$0xff]
    %v700 = vld [vmem:[#allocation13 + $0x358] sm:$0xff]
    %v701 = vld [vmem:[#allocation13 + $0x360] sm:$0xff]
    %v702 = vld [vmem:[#allocation13 + $0x368] sm:$0xff]
    %v703 = vld [vmem:[#allocation13 + $0x370] sm:$0xff]
    %v704 = vld [vmem:[#allocation13 + $0x378] sm:$0xff]
    %v705 = vld [vmem:[#allocation13 + $0x380] sm:$0xff]
    %v706 = vld [vmem:[#allocation13 + $0x388] sm:$0xff]
    %v707 = vld [vmem:[#allocation13 + $0x390] sm:$0xff]
    %v708 = vld [vmem:[#allocation13 + $0x398] sm:$0xff]
    %v709 = vld [vmem:[#allocation13 + $0x3a0] sm:$0xff]
    %v710 = vld [vmem:[#allocation13 + $0x3a8] sm:$0xff]
    %v711 = vld [vmem:[#allocation13 + $0x3b0] sm:$0xff]
    %v712 = vld [vmem:[#allocation13 + $0x3b8] sm:$0xff]
    %v713 = vld [vmem:[#allocation13 + $0x3c0] sm:$0xff]
    %v714 = vld [vmem:[#allocation13 + $0x3c8] sm:$0xff]
    %v715 = vld [vmem:[#allocation13 + $0x3d0] sm:$0xff]
    %v716 = vld [vmem:[#allocation13 + $0x3d8] sm:$0xff]
    %v717 = vld [vmem:[#allocation13 + $0x3e0] sm:$0xff]
    %v718 = vld [vmem:[#allocation13 + $0x3e8] sm:$0xff]
    %v719 = vld [vmem:[#allocation13 + $0x3f0] sm:$0xff]
    %v720 = vld [vmem:[#allocation13 + $0x3f8] sm:$0xff]
    %v721 = vld [vmem:[%s8] sm:$0x1]
    %v723 = vperm.slane %v721, 0
    %725 = vmatpush.msra.mxu0 %v608
    %726 = vmatpush.msra.mxu0 %v607
    %727 = vmatpush.msra.mxu0 %v606
    %728 = vmatpush.msra.mxu0 %v605
    %729 = vmatpush.msra.mxu0 %v604
    %730 = vmatpush.msra.mxu0 %v603
    %731 = vmatpush.msra.mxu0 %v602
    %732 = vmatpush.msra.mxu0 %v601
    %733 = vmatpush.msra.mxu0 %v600
    %734 = vmatpush.msra.mxu0 %v599
    %735 = vmatpush.msra.mxu0 %v598
    %736 = vmatpush.msra.mxu0 %v597
    %737 = vmatpush.msra.mxu0 %v596
    %738 = vmatpush.msra.mxu0 %v595
    %739 = vmatpush.msra.mxu0 %v594
    %740 = vmatpush.msra.mxu0 %v593
    %741 = vmatmul.f32.gmra.mxu0 %v585
    %v742 = vpop.f32.mrf.mxu0
    %v743 = vadd.f32 %v723, %v742
    %744 = vdwg.mxu0
    %745 = vmatpush.msra.mxu0 %v624
    %746 = vmatpush.msra.mxu0 %v623
    %747 = vmatpush.msra.mxu0 %v622
    %748 = vmatpush.msra.mxu0 %v621
    %749 = vmatpush.msra.mxu0 %v620
    %750 = vmatpush.msra.mxu0 %v619
    %751 = vmatpush.msra.mxu0 %v618
    %752 = vmatpush.msra.mxu0 %v617
    %753 = vmatpush.msra.mxu0 %v616
    %754 = vmatpush.msra.mxu0 %v615
    %755 = vmatpush.msra.mxu0 %v614
    %756 = vmatpush.msra.mxu0 %v613
    %757 = vmatpush.msra.mxu0 %v612
    %758 = vmatpush.msra.mxu0 %v611
    %759 = vmatpush.msra.mxu0 %v610
    %760 = vmatpush.msra.mxu0 %v609
    %761 = vmatmul.f32.gmra.mxu0 %v586
    %v762 = vpop.f32.mrf.mxu0
    %v763 = vadd.f32 %v743, %v762
    %764 = vdwg.mxu0
    %765 = vmatpush.msra.mxu0 %v640
    %766 = vmatpush.msra.mxu0 %v639
    %767 = vmatpush.msra.mxu0 %v638
    %768 = vmatpush.msra.mxu0 %v637
    %769 = vmatpush.msra.mxu0 %v636
    %770 = vmatpush.msra.mxu0 %v635
    %771 = vmatpush.msra.mxu0 %v634
    %772 = vmatpush.msra.mxu0 %v633
    %773 = vmatpush.msra.mxu0 %v632
    %774 = vmatpush.msra.mxu0 %v631
    %775 = vmatpush.msra.mxu0 %v630
    %776 = vmatpush.msra.mxu0 %v629
    %777 = vmatpush.msra.mxu0 %v628
    %778 = vmatpush.msra.mxu0 %v627
    %779 = vmatpush.msra.mxu0 %v626
    %780 = vmatpush.msra.mxu0 %v625
    %781 = vmatmul.f32.gmra.mxu0 %v587
    %v782 = vpop.f32.mrf.mxu0
    %v783 = vadd.f32 %v763, %v782
    %784 = vdwg.mxu0
    %785 = vmatpush.msra.mxu0 %v656
    %786 = vmatpush.msra.mxu0 %v655
    %787 = vmatpush.msra.mxu0 %v654
    %788 = vmatpush.msra.mxu0 %v653
    %789 = vmatpush.msra.mxu0 %v652
    %790 = vmatpush.msra.mxu0 %v651
    %791 = vmatpush.msra.mxu0 %v650
    %792 = vmatpush.msra.mxu0 %v649
    %793 = vmatpush.msra.mxu0 %v648
    %794 = vmatpush.msra.mxu0 %v647
    %795 = vmatpush.msra.mxu0 %v646
    %796 = vmatpush.msra.mxu0 %v645
    %797 = vmatpush.msra.mxu0 %v644
    %798 = vmatpush.msra.mxu0 %v643
    %799 = vmatpush.msra.mxu0 %v642
    %800 = vmatpush.msra.mxu0 %v641
    %801 = vmatmul.f32.gmra.mxu0 %v588
    %v802 = vpop.f32.mrf.mxu0
    %v803 = vadd.f32 %v783, %v802
    %804 = vdwg.mxu0
    %805 = vmatpush.msra.mxu0 %v672
    %806 = vmatpush.msra.mxu0 %v671
    %807 = vmatpush.msra.mxu0 %v670
    %808 = vmatpush.msra.mxu0 %v669
    %809 = vmatpush.msra.mxu0 %v668
    %810 = vmatpush.msra.mxu0 %v667
    %811 = vmatpush.msra.mxu0 %v666
    %812 = vmatpush.msra.mxu0 %v665
    %813 = vmatpush.msra.mxu0 %v664
    %814 = vmatpush.msra.mxu0 %v663
    %815 = vmatpush.msra.mxu0 %v662
    %816 = vmatpush.msra.mxu0 %v661
    %817 = vmatpush.msra.mxu0 %v660
    %818 = vmatpush.msra.mxu0 %v659
    %819 = vmatpush.msra.mxu0 %v658
    %820 = vmatpush.msra.mxu0 %v657
    %821 = vmatmul.f32.gmra.mxu0 %v589
    %v822 = vpop.f32.mrf.mxu0
    %v823 = vadd.f32 %v803, %v822
    %824 = vdwg.mxu0
    %825 = vmatpush.msra.mxu0 %v688
    %826 = vmatpush.msra.mxu0 %v687
    %827 = vmatpush.msra.mxu0 %v686
    %828 = vmatpush.msra.mxu0 %v685
    %829 = vmatpush.msra.mxu0 %v684
    %830 = vmatpush.msra.mxu0 %v683
    %831 = vmatpush.msra.mxu0 %v682
    %832 = vmatpush.msra.mxu0 %v681
    %833 = vmatpush.msra.mxu0 %v680
    %834 = vmatpush.msra.mxu0 %v679
    %835 = vmatpush.msra.mxu0 %v678
    %836 = vmatpush.msra.mxu0 %v677
    %837 = vmatpush.msra.mxu0 %v676
    %838 = vmatpush.msra.mxu0 %v675
    %839 = vmatpush.msra.mxu0 %v674
    %840 = vmatpush.msra.mxu0 %v673
    %841 = vmatmul.f32.gmra.mxu0 %v590
    %v842 = vpop.f32.mrf.mxu0
    %v843 = vadd.f32 %v823, %v842
    %844 = vdwg.mxu0
    %845 = vmatpush.msra.mxu0 %v704
    %846 = vmatpush.msra.mxu0 %v703
    %847 = vmatpush.msra.mxu0 %v702
    %848 = vmatpush.msra.mxu0 %v701
    %849 = vmatpush.msra.mxu0 %v700
    %850 = vmatpush.msra.mxu0 %v699
    %851 = vmatpush.msra.mxu0 %v698
    %852 = vmatpush.msra.mxu0 %v697
    %853 = vmatpush.msra.mxu0 %v696
    %854 = vmatpush.msra.mxu0 %v695
    %855 = vmatpush.msra.mxu0 %v694
    %856 = vmatpush.msra.mxu0 %v693
    %857 = vmatpush.msra.mxu0 %v692
    %858 = vmatpush.msra.mxu0 %v691
    %859 = vmatpush.msra.mxu0 %v690
    %860 = vmatpush.msra.mxu0 %v689
    %861 = vmatmul.f32.gmra.mxu0 %v591
    %v862 = vpop.f32.mrf.mxu0
    %v863 = vadd.f32 %v843, %v862
    %864 = vdwg.mxu0
    %865 = vmatpush.msra.mxu0 %v720
    %866 = vmatpush.msra.mxu0 %v719
    %867 = vmatpush.msra.mxu0 %v718
    %868 = vmatpush.msra.mxu0 %v717
    %869 = vmatpush.msra.mxu0 %v716
    %870 = vmatpush.msra.mxu0 %v715
    %871 = vmatpush.msra.mxu0 %v714
    %872 = vmatpush.msra.mxu0 %v713
    %873 = vmatpush.msra.mxu0 %v712
    %874 = vmatpush.msra.mxu0 %v711
    %875 = vmatpush.msra.mxu0 %v710
    %876 = vmatpush.msra.mxu0 %v709
    %877 = vmatpush.msra.mxu0 %v708
    %878 = vmatpush.msra.mxu0 %v707
    %879 = vmatpush.msra.mxu0 %v706
    %880 = vmatpush.msra.mxu0 %v705
    %881 = vmatmul.f32.gmra.mxu0 %v592
    %v882 = vpop.f32.mrf.mxu0
    %v883 = vadd.f32 %v863, %v882
    %884 = vdwg.mxu0
    %885 = vst [vmem:[#allocation14] sm:$0xff] %v883
    // Predicated region
    $region66: #{tpu_custom_call.1} parent=1 // pred_check
      _
    $region67: #{tpu_custom_call.1} parent=1 // pred_check_branch
      %887 = sbr.rel (0) target = $region69
    $region68: #{tpu_custom_call.1} parent=1 // pred_region
      %889 = vsyncadd [#allocation4], 0
      %s891 = sshll.u32 [#allocation14], 4
      %s892 = int_to_ptr.vmem [resolvable:$true] %s891
      %s893 = sshll.u32 %s9, 4
      %s894 = int_to_ptr.hbm [resolvable:$true] %s893
      %896 = dma.vmem_to_hbm [thread:$0]  %s892, 128, %s894, [#allocation4]
    $region69: #{tpu_custom_call.1} parent=1 // pred_fallthru
      _
    // Predicated region
    $region70: #{tpu_custom_call.1} parent=1 // pred_check
      _
    $region71: #{tpu_custom_call.1} parent=1 // pred_check_branch
      %898 = sbr.rel (0) target = $region73
    $region72: #{tpu_custom_call.1} parent=1 // pred_region
      %900 = dma.done [#allocation4], 128
    $region73: #{tpu_custom_call.1} parent=1 // pred_fallthru
      _
    %901 = vsyncpa [#allocation3], 1
    %902 = vsyncpa [#allocation6], 1
    %903 = vsyncpa [#allocation9], 1
    %904 = vsyncpa [#allocation12], 1
    %905 = vsyncpa [#allocation4], 1

</llo_original>
